<compile_context>
chip_gen: v7x
topology: tpu7x:2x2x1
jax: 0.10.0
libtpu: 0.0.40
codegen_flags: <defaults>
</compile_context>

<pallas_src>
import functools

import jax
import jax.numpy as jnp
import numpy as np
from jax.experimental import pallas as pl
from jax.experimental.pallas import tpu as pltpu


# ----------------------------------------------------------------------------
# Fused Pallas kernel: embedding gather -> L LSTM cells -> attention -> linear
# ----------------------------------------------------------------------------
def _make_decoder_kernel(L):
    """Build the fused decoder-step kernel for a static layer count L."""

    def kernel(idx_ref, emb_hbm, enc_ref, h_in_ref, c_in_ref, *args):
        # ---- unpack variadic refs (L is static; loops unroll at trace) ------
        lstm_refs = args[:2 * L]                  # (w_cat bf16, bias f32) per layer
        lin_w_ref = args[2 * L]                   # (2H, O_pad) bf16, O_pad % 128 == 0
        lin_b_ref = args[2 * L + 1]               # (1, O_pad)  f32
        dec_ref, h_out_ref, c_out_ref, attn_ref = args[2 * L + 2:2 * L + 6]
        emb_buf, emb_sem = args[2 * L + 6:]       # (B, E) VMEM scratch, DMA sems

        B = h_in_ref.shape[1]
        H = h_in_ref.shape[2]

        # ---- embedding lookup: B small row DMAs from the HBM table ---------
        # (table never enters VMEM wholesale; no one-hot MXU work)
        copies = []
        for b in range(B):
            row = idx_ref[b]                                        # SMEM scalar
            cp = pltpu.make_async_copy(
                emb_hbm.at[pl.ds(row, 1), :],                       # (1, E) in HBM
                emb_buf.at[pl.ds(b, 1), :],                         # (1, E) in VMEM
                emb_sem.at[b])
            cp.start()
            copies.append(cp)
        for cp in copies:
            cp.wait()
        x = emb_buf[...].astype(jnp.float32)                        # (B, E)

        # ---- L stacked LSTM cells, single time step (gate order i,f,g,o) ----
        for l in range(L):
            w_ref = lstm_refs[2 * l]          # (in+H, 4H) bf16, g cols pre-scaled x2
            b_ref = lstm_refs[2 * l + 1]      # (1, 4H)    f32,  g cols pre-scaled x2
            h_prev = h_in_ref[l]              # (B, H) f32
            c_prev = c_in_ref[l]              # (B, H) f32

            # fused gate matmul: concat([x, h]) @ [wih; whh] on the MXU (bf16 in,
            # f32 accumulation)
            xh = jnp.concatenate([x, h_prev], axis=-1).astype(jnp.bfloat16)
            gates = jnp.dot(xh, w_ref[...],
                            preferred_element_type=jnp.float32) + b_ref[...]

            # single EUP sigmoid pass over all 4H lanes; tanh(g) recovered as
            # 2*sigmoid(2g) - 1 (the x2 was folded into the g weight columns).
            s = jax.nn.sigmoid(gates)                               # (B, 4H)
            i_g = s[:, 0 * H:1 * H]
            f_g = s[:, 1 * H:2 * H]
            g_g = 2.0 * s[:, 2 * H:3 * H] - 1.0
            o_g = s[:, 3 * H:4 * H]

            c_new = f_g * c_prev + i_g * g_g
            h_new = o_g * jnp.tanh(c_new)

            # write new state straight into the (L, B, H) outputs (aliased to
            # the hidden/cell inputs; layer l's input is read before its write)
            h_out_ref[l] = h_new.astype(h_out_ref.dtype)
            c_out_ref[l] = c_new.astype(c_out_ref.dtype)
            x = h_new                                               # next layer in
        rnn_out = x                                                 # (B, H) f32

        # ---- dot-product attention over the encoder outputs (MXU dots) ------
        # B is the tiny decode batch, so the batch loop unrolls into a handful
        # of 2-D matmuls (same q @ k.T / p @ v pattern as paged attention).
        # TODO(synk): at production S, tile over S with an online-softmax
        #   accumulator instead of loading the whole (S, H) slab per row.
        enc_rows = [enc_ref[b] for b in range(B)]                   # (S, H) bf16 each
        score_rows = []
        for b in range(B):
            q_b = rnn_out[b:b + 1, :].astype(jnp.bfloat16)          # (1, H)
            score_rows.append(
                jnp.dot(q_b, enc_rows[b].T,
                        preferred_element_type=jnp.float32))        # (1, S)
        scores = jnp.concatenate(score_rows, axis=0)                # (B, S)

        m = jnp.max(scores, axis=1, keepdims=True)
        e = jnp.exp(scores - m)
        attn = e * pl.reciprocal(jnp.sum(e, axis=1, keepdims=True),
                                 approx=True)                       # (B, S)

        ctx_rows = []
        for b in range(B):
            a_b = attn[b:b + 1, :].astype(jnp.bfloat16)             # (1, S)
            ctx_rows.append(
                jnp.dot(a_b, enc_rows[b],
                        preferred_element_type=jnp.float32))        # (1, H)
        context = jnp.concatenate(ctx_rows, axis=0)                 # (B, H)

        # ---- output linear on concat([context, rnn_out]), lane-dense O_pad --
        cat = jnp.concatenate([context, rnn_out], axis=-1).astype(jnp.bfloat16)
        dec = jnp.dot(cat, lin_w_ref[...],
                      preferred_element_type=jnp.float32) + lin_b_ref[...]

        dec_ref[...] = dec.astype(dec_ref.dtype)                    # unmasked vst
        attn_ref[...] = attn.astype(attn_ref.dtype)

    return kernel


# ----------------------------------------------------------------------------
# Host-side parameter preparation (done ONCE, outside the per-token loop)
# ----------------------------------------------------------------------------
def prepare_kernel_params(params, lane=128):
    """Fuse [wih; whh], fold the tanh x2 into the g-gate columns, cast the
    matmul weights to bf16, and pad the linear to a 128-lane-dense width."""
    H = params["lstm"][0][1].shape[0]              # whh is (H, 4H)
    H4 = 4 * H
    O = params["lin_w"].shape[-1]
    o_pad = ((O + lane - 1) // lane) * lane

    # scale the g-gate (columns [2H, 3H)) by 2 so tanh(g) == 2*sigmoid(2g) - 1
    gate_scale = jnp.ones((H4,), jnp.float32).at[2 * H:3 * H].set(2.0)

    lstm = []
    for (wih, whh, b) in params["lstm"]:
        w_cat = jnp.concatenate([wih, whh], axis=0) * gate_scale[None, :]
        lstm.append((w_cat.astype(jnp.bfloat16),                    # (in+H, 4H) bf16
                     (b * gate_scale[None, :]).astype(jnp.float32)))  # (1, 4H) f32

    return {
        "embedding": params["embedding"],                           # (V, E) f32 (HBM)
        "lstm": lstm,
        "lin_w": jnp.pad(params["lin_w"],
                         ((0, 0), (0, o_pad - O))).astype(jnp.bfloat16),  # (2H, O_pad)
        "lin_b": jnp.pad(params["lin_b"],
                         ((0, 0), (0, o_pad - O))).astype(jnp.float32),   # (1, O_pad)
    }


# ----------------------------------------------------------------------------
# Wrapper: one fused pallas_call per decoder step
# ----------------------------------------------------------------------------
@functools.partial(jax.jit, static_argnames=("out_dim",))
def decoder_forward(kparams, enc_out, idxs, hidden, cell, *, out_dim):
    """Pallas implementation of Decoder.forward (one decode step).

    Returns (dec_out (B,O), hidden (L,B,H), cell (L,B,H), attn_weight (B,S,1)).
    """
    L, B, H = hidden.shape
    S = enc_out.shape[1]
    E = kparams["embedding"].shape[1]
    O_pad = kparams["lin_w"].shape[-1]

    # bf16 attention operand (in production the encoder should emit bf16 once).
    enc_bf16 = enc_out.astype(jnp.bfloat16)
    idx1d = idxs.reshape(B).astype(jnp.int32)

    inputs = [idx1d, kparams["embedding"], enc_bf16, hidden, cell]
    for w_cat, b in kparams["lstm"]:
        inputs.extend([w_cat, b])
    inputs.extend([kparams["lin_w"], kparams["lin_b"]])

    smem_spec = pl.BlockSpec(memory_space=pltpu.MemorySpace.SMEM)   # idxs scalars
    hbm_spec = pl.BlockSpec(memory_space=pl.ANY)                    # embedding table
    vmem_spec = pl.BlockSpec(memory_space=pltpu.MemorySpace.VMEM)
    in_specs = [smem_spec, hbm_spec] + [vmem_spec] * (len(inputs) - 2)

    out_shape = (
        jax.ShapeDtypeStruct((B, O_pad), jnp.float32),   # padded logits (lane-dense)
        jax.ShapeDtypeStruct((L, B, H), jnp.float32),    # new hidden
        jax.ShapeDtypeStruct((L, B, H), jnp.float32),    # new cell
        jax.ShapeDtypeStruct((B, S), jnp.float32),       # attention weights
    )

    # VMEM budget from the actually-resident buffers (VMEM inputs + outputs +
    # embedding-row scratch), with 2x headroom; re-derive per generation.
    def _nbytes(a):
        return int(np.prod(a.shape)) * jnp.dtype(a.dtype).itemsize
    resident = sum(_nbytes(a) for a in inputs[2:])
    resident += sum(_nbytes(s) for s in out_shape)
    resident += B * E * jnp.dtype(kparams["embedding"].dtype).itemsize
    vmem_limit = int(min(100 * 1024 * 1024,
                         max(16 * 1024 * 1024, 2 * resident + (1 << 20))))

    dec_pad, h_new, c_new, attn = pl.pallas_call(
        _make_decoder_kernel(L),
        out_shape=out_shape,
        in_specs=in_specs,
        out_specs=(vmem_spec, vmem_spec, vmem_spec, vmem_spec),
        scratch_shapes=[
            pltpu.VMEM((B, E), kparams["embedding"].dtype),   # gathered rows
            pltpu.SemaphoreType.DMA((B,)),                    # one sem per row DMA
        ],
        # hidden -> new hidden, cell -> new cell: in-place state update when the
        # caller donates the buffers (per-token decode loop); safe otherwise.
        input_output_aliases={3: 1, 4: 2},
        compiler_params=pltpu.CompilerParams(vmem_limit_bytes=vmem_limit),
    )(*inputs)

    dec_out = dec_pad[:, :out_dim]                       # slice off lane padding
    attn_weight = attn[:, :, None]                       # (B, S, 1) like torch
    return dec_out, h_new, c_new, attn_weight


# ----------------------------------------------------------------------------
# Pure-JAX reference (mirrors the PyTorch forward) for a numerical sanity check
# ----------------------------------------------------------------------------
def decoder_forward_ref(params, enc_out, idxs, hidden, cell):
    embed = params["embedding"][idxs]                    # (B, E)
    H = hidden.shape[-1]
    new_h, new_c = [], []
    layer_in = embed
    for l, (wih, whh, b) in enumerate(params["lstm"]):
        gates = layer_in @ wih + hidden[l] @ whh + b
        i = jax.nn.sigmoid(gates[:, 0 * H:1 * H])
        f = jax.nn.sigmoid(gates[:, 1 * H:2 * H])
        g = jnp.tanh(gates[:, 2 * H:3 * H])
        o = jax.nn.sigmoid(gates[:, 3 * H:4 * H])
        c_new = f * cell[l] + i * g
        h_new = o * jnp.tanh(c_new)
        new_h.append(h_new)
        new_c.append(c_new)
        layer_in = h_new
    rnn_out = layer_in
    scores = jnp.einsum("bsh,bh->bs", enc_out, rnn_out)
    attn = jax.nn.softmax(scores, axis=1)
    context = jnp.einsum("bs,bsh->bh", attn, enc_out)
    cat = jnp.concatenate([context, rnn_out], axis=-1)
    dec_out = cat @ params["lin_w"] + params["lin_b"]
    return dec_out, jnp.stack(new_h), jnp.stack(new_c), attn[:, :, None]


# ----------------------------------------------------------------------------
if __name__ == "__main__":
    # Small, forward-consistent shapes.
    B, S = 2, 16              # batch, encoder sequence length
    V, E = 32, 32             # vocab size, embed_size
    H, O = 32, 32             # rnn_hidden_size, output_dim
    L = 2                     # layer_num (exercise the stacked-layer path)

    key = jax.random.PRNGKey(0)
    keys = jax.random.split(key, 12)

    # Deterministic synthetic parameters (stand-in for the pickled embedding
    # and the nn.LSTM / nn.Linear weights, already transposed to (in, out)).
    params = {
        "embedding": 0.1 * jax.random.normal(keys[0], (V, E), jnp.float32),
        "lstm": [
            (
                0.1 * jax.random.normal(keys[1 + 3 * l],
                                        (E if l == 0 else H, 4 * H), jnp.float32),
                0.1 * jax.random.normal(keys[2 + 3 * l], (H, 4 * H), jnp.float32),
                0.1 * jax.random.normal(keys[3 + 3 * l], (1, 4 * H), jnp.float32),
            )
            for l in range(L)
        ],
        "lin_w": 0.1 * jax.random.normal(keys[10], (2 * H, O), jnp.float32),
        "lin_b": 0.1 * jax.random.normal(keys[11], (1, O), jnp.float32),
    }

    # Inputs: enc_out (B,S,H), idxs (B,), hidden/cell (L,B,H)
    enc_out = jax.random.normal(jax.random.PRNGKey(1), (B, S, H), jnp.float32)
    idxs = jax.random.randint(jax.random.PRNGKey(2), (B,), 0, V, jnp.int32)
    hidden = 0.1 * jax.random.normal(jax.random.PRNGKey(3), (L, B, H), jnp.float32)
    cell = 0.1 * jax.random.normal(jax.random.PRNGKey(4), (L, B, H), jnp.float32)

    kparams = prepare_kernel_params(params)

    dec_out, h_new, c_new, attn_w = decoder_forward(
        kparams, enc_out, idxs, hidden, cell, out_dim=O)
    jax.block_until_ready((dec_out, h_new, c_new, attn_w))

    # Sanity check vs the f32 pure-JAX reference (kernel stores weights/enc in
    # bf16 per the perf review, so compare with a bf16-appropriate tolerance).
    r_dec, r_h, r_c, r_attn = decoder_forward_ref(params, enc_out, idxs, hidden, cell)
    assert dec_out.shape == (B, O) and attn_w.shape == (B, S, 1)
    assert h_new.shape == (L, B, H) and c_new.shape == (L, B, H)
    np.testing.assert_allclose(np.asarray(dec_out), np.asarray(r_dec), rtol=2e-2, atol=2e-2)
    np.testing.assert_allclose(np.asarray(h_new), np.asarray(r_h), rtol=2e-2, atol=2e-2)
    np.testing.assert_allclose(np.asarray(c_new), np.asarray(r_c), rtol=2e-2, atol=2e-2)
    np.testing.assert_allclose(np.asarray(attn_w), np.asarray(r_attn), rtol=2e-2, atol=2e-2)

    print("KERNEL_OK")
</pallas_src>

<mosaic_0001>
module attributes {stable_mosaic.version = 11 : i64} {
  func.func @kernel(%arg0: memref<2xi32, #tpu.memory_space<smem>>, %arg1: memref<32x32xf32, #tpu.memory_space<any>>, %arg2: memref<2x16x32xbf16, #tpu.memory_space<vmem>>, %arg3: memref<2x2x32xf32, #tpu.memory_space<vmem>>, %arg4: memref<2x2x32xf32, #tpu.memory_space<vmem>>, %arg5: memref<64x128xbf16, #tpu.memory_space<vmem>>, %arg6: memref<1x128xf32, #tpu.memory_space<vmem>>, %arg7: memref<64x128xbf16, #tpu.memory_space<vmem>>, %arg8: memref<1x128xf32, #tpu.memory_space<vmem>>, %arg9: memref<64x128xbf16, #tpu.memory_space<vmem>>, %arg10: memref<1x128xf32, #tpu.memory_space<vmem>>, %arg11: memref<2x128xf32, #tpu.memory_space<vmem>>, %arg12: memref<2x2x32xf32, #tpu.memory_space<vmem>>, %arg13: memref<2x2x32xf32, #tpu.memory_space<vmem>>, %arg14: memref<2x16xf32, #tpu.memory_space<vmem>>, %arg15: memref<2x32xf32, #tpu.memory_space<vmem>>, %arg16: memref<2x!tpu.dma_semaphore, #tpu.memory_space<semaphore_mem>>) attributes {dimension_semantics = [], scalar_prefetch = 0 : i64, scratch_operands = 2 : i64, tpu.core_type = #tpu.core_type<tc>} {
    %c0 = arith.constant 0 : index
    %0 = memref.load %arg0[%c0] : memref<2xi32, #tpu.memory_space<smem>>
    %c0_i32 = arith.constant 0 : i32
    %c0_i32_0 = arith.constant 0 : i32
    %1 = tpu.memref_slice %arg1[%0, %c0_i32_0] : memref<32x32xf32, #tpu.memory_space<any>> -> memref<1x32xf32, #tpu.memory_space<any>>
    %c0_i32_1 = arith.constant 0 : i32
    %c0_i32_2 = arith.constant 0 : i32
    %2 = tpu.memref_slice %arg15[%c0_i32_1, %c0_i32_2] : memref<2x32xf32, #tpu.memory_space<vmem>> -> memref<1x32xf32, #tpu.memory_space<vmem>>
    %3 = tpu.memref_slice %arg16[%c0_i32] : memref<2x!tpu.dma_semaphore, #tpu.memory_space<semaphore_mem>> -> memref<1x!tpu.dma_semaphore, #tpu.memory_space<semaphore_mem>>
    %4 = tpu.memref_squeeze %3 : memref<1x!tpu.dma_semaphore, #tpu.memory_space<semaphore_mem>> -> memref<!tpu.dma_semaphore, #tpu.memory_space<semaphore_mem>>
    tpu.enqueue_dma source(%1 : memref<1x32xf32, #tpu.memory_space<any>>) target(%2 : memref<1x32xf32, #tpu.memory_space<vmem>>) target_semaphore(%4 : memref<!tpu.dma_semaphore, #tpu.memory_space<semaphore_mem>>)
    %c1 = arith.constant 1 : index
    %5 = memref.load %arg0[%c1] : memref<2xi32, #tpu.memory_space<smem>>
    %c1_i32 = arith.constant 1 : i32
    %c0_i32_3 = arith.constant 0 : i32
    %6 = tpu.memref_slice %arg1[%5, %c0_i32_3] : memref<32x32xf32, #tpu.memory_space<any>> -> memref<1x32xf32, #tpu.memory_space<any>>
    %c1_i32_4 = arith.constant 1 : i32
    %c0_i32_5 = arith.constant 0 : i32
    %7 = tpu.memref_slice %arg15[%c1_i32_4, %c0_i32_5] : memref<2x32xf32, #tpu.memory_space<vmem>> -> memref<1x32xf32, #tpu.memory_space<vmem>>
    %8 = tpu.memref_slice %arg16[%c1_i32] : memref<2x!tpu.dma_semaphore, #tpu.memory_space<semaphore_mem>> -> memref<1x!tpu.dma_semaphore, #tpu.memory_space<semaphore_mem>>
    %9 = tpu.memref_squeeze %8 : memref<1x!tpu.dma_semaphore, #tpu.memory_space<semaphore_mem>> -> memref<!tpu.dma_semaphore, #tpu.memory_space<semaphore_mem>>
    tpu.enqueue_dma source(%6 : memref<1x32xf32, #tpu.memory_space<any>>) target(%7 : memref<1x32xf32, #tpu.memory_space<vmem>>) target_semaphore(%9 : memref<!tpu.dma_semaphore, #tpu.memory_space<semaphore_mem>>)
    %c0_i32_6 = arith.constant 0 : i32
    %c0_i32_7 = arith.constant 0 : i32
    %10 = tpu.memref_slice %arg1[%0, %c0_i32_7] : memref<32x32xf32, #tpu.memory_space<any>> -> memref<1x32xf32, #tpu.memory_space<any>>
    %c0_i32_8 = arith.constant 0 : i32
    %c0_i32_9 = arith.constant 0 : i32
    %11 = tpu.memref_slice %arg15[%c0_i32_8, %c0_i32_9] : memref<2x32xf32, #tpu.memory_space<vmem>> -> memref<1x32xf32, #tpu.memory_space<vmem>>
    %12 = tpu.memref_slice %arg16[%c0_i32_6] : memref<2x!tpu.dma_semaphore, #tpu.memory_space<semaphore_mem>> -> memref<1x!tpu.dma_semaphore, #tpu.memory_space<semaphore_mem>>
    %13 = tpu.memref_squeeze %12 : memref<1x!tpu.dma_semaphore, #tpu.memory_space<semaphore_mem>> -> memref<!tpu.dma_semaphore, #tpu.memory_space<semaphore_mem>>
    tpu.wait_dma2 semaphore(%13 : memref<!tpu.dma_semaphore, #tpu.memory_space<semaphore_mem>>) src(%10 : memref<1x32xf32, #tpu.memory_space<any>>) dst(%11 : memref<1x32xf32, #tpu.memory_space<vmem>>)
    %c1_i32_10 = arith.constant 1 : i32
    %c0_i32_11 = arith.constant 0 : i32
    %14 = tpu.memref_slice %arg1[%5, %c0_i32_11] : memref<32x32xf32, #tpu.memory_space<any>> -> memref<1x32xf32, #tpu.memory_space<any>>
    %c1_i32_12 = arith.constant 1 : i32
    %c0_i32_13 = arith.constant 0 : i32
    %15 = tpu.memref_slice %arg15[%c1_i32_12, %c0_i32_13] : memref<2x32xf32, #tpu.memory_space<vmem>> -> memref<1x32xf32, #tpu.memory_space<vmem>>
    %16 = tpu.memref_slice %arg16[%c1_i32_10] : memref<2x!tpu.dma_semaphore, #tpu.memory_space<semaphore_mem>> -> memref<1x!tpu.dma_semaphore, #tpu.memory_space<semaphore_mem>>
    %17 = tpu.memref_squeeze %16 : memref<1x!tpu.dma_semaphore, #tpu.memory_space<semaphore_mem>> -> memref<!tpu.dma_semaphore, #tpu.memory_space<semaphore_mem>>
    tpu.wait_dma2 semaphore(%17 : memref<!tpu.dma_semaphore, #tpu.memory_space<semaphore_mem>>) src(%14 : memref<1x32xf32, #tpu.memory_space<any>>) dst(%15 : memref<1x32xf32, #tpu.memory_space<vmem>>)
    %c0_14 = arith.constant 0 : index
    %c0_15 = arith.constant 0 : index
    %18 = vector.load %arg15[%c0_14, %c0_15] : memref<2x32xf32, #tpu.memory_space<vmem>>, vector<2x32xf32>
    %c0_16 = arith.constant 0 : index
    %c0_17 = arith.constant 0 : index
    %c0_18 = arith.constant 0 : index
    %19 = vector.load %arg3[%c0_16, %c0_17, %c0_18] : memref<2x2x32xf32, #tpu.memory_space<vmem>>, vector<1x2x32xf32>
    %20 = vector.shape_cast %19 : vector<1x2x32xf32> to vector<2x32xf32>
    %c0_19 = arith.constant 0 : index
    %c0_20 = arith.constant 0 : index
    %c0_21 = arith.constant 0 : index
    %21 = vector.load %arg4[%c0_19, %c0_20, %c0_21] : memref<2x2x32xf32, #tpu.memory_space<vmem>>, vector<1x2x32xf32>
    %22 = vector.shape_cast %21 : vector<1x2x32xf32> to vector<2x32xf32>
    %23 = tpu.concatenate %18, %20 in 1 : vector<2x32xf32>, vector<2x32xf32> -> vector<2x64xf32>
    %24 = arith.truncf %23 : vector<2x64xf32> to vector<2x64xbf16>
    %c0_22 = arith.constant 0 : index
    %c0_23 = arith.constant 0 : index
    %25 = vector.load %arg5[%c0_22, %c0_23] : memref<64x128xbf16, #tpu.memory_space<vmem>>, vector<64x128xbf16>
    %cst = arith.constant dense<0.000000e+00> : vector<2x128xf32>
    %26 = tpu.matmul %24, %25, %cst {dimension_numbers = #tpu.dot_dimension_numbers<[1], [0], [0], [1], [0, 0, 1, 1], [], []>} : vector<2x64xbf16>, vector<64x128xbf16>, vector<2x128xf32> -> vector<2x128xf32>
    %c0_24 = arith.constant 0 : index
    %c0_25 = arith.constant 0 : index
    %27 = vector.load %arg6[%c0_24, %c0_25] : memref<1x128xf32, #tpu.memory_space<vmem>>, vector<1x128xf32>
    %28 = vector.broadcast %27 : vector<1x128xf32> to vector<2x128xf32>
    %29 = arith.addf %26, %28 : vector<2x128xf32>
    %30 = arith.negf %29 : vector<2x128xf32>
    %31 = math.exp %30 : vector<2x128xf32>
    %cst_26 = arith.constant 1.000000e+00 : f32
    %32 = vector.broadcast %cst_26 : f32 to vector<2x128xf32>
    %33 = arith.addf %32, %31 : vector<2x128xf32>
    %34 = arith.divf %32, %33 : vector<2x128xf32>
    %35 = vector.extract_strided_slice %34 {offsets = [0, 0], sizes = [2, 32], strides = [1, 1]} : vector<2x128xf32> to vector<2x32xf32>
    %36 = vector.extract_strided_slice %34 {offsets = [0, 32], sizes = [2, 32], strides = [1, 1]} : vector<2x128xf32> to vector<2x32xf32>
    %37 = vector.extract_strided_slice %34 {offsets = [0, 64], sizes = [2, 32], strides = [1, 1]} : vector<2x128xf32> to vector<2x32xf32>
    %cst_27 = arith.constant 2.000000e+00 : f32
    %38 = vector.broadcast %cst_27 : f32 to vector<2x32xf32>
    %39 = arith.mulf %38, %37 : vector<2x32xf32>
    %cst_28 = arith.constant 1.000000e+00 : f32
    %40 = vector.broadcast %cst_28 : f32 to vector<2x32xf32>
    %41 = arith.subf %39, %40 : vector<2x32xf32>
    %42 = vector.extract_strided_slice %34 {offsets = [0, 96], sizes = [2, 32], strides = [1, 1]} : vector<2x128xf32> to vector<2x32xf32>
    %43 = arith.mulf %36, %22 : vector<2x32xf32>
    %44 = arith.mulf %35, %41 : vector<2x32xf32>
    %45 = arith.addf %43, %44 : vector<2x32xf32>
    %46 = math.tanh %45 : vector<2x32xf32>
    %47 = arith.mulf %42, %46 : vector<2x32xf32>
    %c0_29 = arith.constant 0 : index
    %c0_30 = arith.constant 0 : index
    %c0_31 = arith.constant 0 : index
    %48 = vector.load %arg12[%c0_29, %c0_30, %c0_31] : memref<2x2x32xf32, #tpu.memory_space<vmem>>, vector<1x2x32xf32>
    %49 = vector.shape_cast %48 : vector<1x2x32xf32> to vector<2x32xf32>
    %50 = vector.shape_cast %47 : vector<2x32xf32> to vector<1x2x32xf32>
    tpu.vector_store %arg12[%c0_29, %c0_30, %c0_31], %50 {strides = array<i32>} : memref<2x2x32xf32, #tpu.memory_space<vmem>>, vector<1x2x32xf32>,
    %c0_32 = arith.constant 0 : index
    %c0_33 = arith.constant 0 : index
    %c0_34 = arith.constant 0 : index
    %51 = vector.load %arg13[%c0_32, %c0_33, %c0_34] : memref<2x2x32xf32, #tpu.memory_space<vmem>>, vector<1x2x32xf32>
    %52 = vector.shape_cast %51 : vector<1x2x32xf32> to vector<2x32xf32>
    %53 = vector.shape_cast %45 : vector<2x32xf32> to vector<1x2x32xf32>
    tpu.vector_store %arg13[%c0_32, %c0_33, %c0_34], %53 {strides = array<i32>} : memref<2x2x32xf32, #tpu.memory_space<vmem>>, vector<1x2x32xf32>,
    %c1_35 = arith.constant 1 : index
    %c0_36 = arith.constant 0 : index
    %c0_37 = arith.constant 0 : index
    %54 = vector.load %arg3[%c1_35, %c0_36, %c0_37] : memref<2x2x32xf32, #tpu.memory_space<vmem>>, vector<1x2x32xf32>
    %55 = vector.shape_cast %54 : vector<1x2x32xf32> to vector<2x32xf32>
    %c1_38 = arith.constant 1 : index
    %c0_39 = arith.constant 0 : index
    %c0_40 = arith.constant 0 : index
    %56 = vector.load %arg4[%c1_38, %c0_39, %c0_40] : memref<2x2x32xf32, #tpu.memory_space<vmem>>, vector<1x2x32xf32>
    %57 = vector.shape_cast %56 : vector<1x2x32xf32> to vector<2x32xf32>
    %58 = tpu.concatenate %47, %55 in 1 : vector<2x32xf32>, vector<2x32xf32> -> vector<2x64xf32>
    %59 = arith.truncf %58 : vector<2x64xf32> to vector<2x64xbf16>
    %c0_41 = arith.constant 0 : index
    %c0_42 = arith.constant 0 : index
    %60 = vector.load %arg7[%c0_41, %c0_42] : memref<64x128xbf16, #tpu.memory_space<vmem>>, vector<64x128xbf16>
    %cst_43 = arith.constant dense<0.000000e+00> : vector<2x128xf32>
    %61 = tpu.matmul %59, %60, %cst_43 {dimension_numbers = #tpu.dot_dimension_numbers<[1], [0], [0], [1], [0, 0, 1, 1], [], []>} : vector<2x64xbf16>, vector<64x128xbf16>, vector<2x128xf32> -> vector<2x128xf32>
    %c0_44 = arith.constant 0 : index
    %c0_45 = arith.constant 0 : index
    %62 = vector.load %arg8[%c0_44, %c0_45] : memref<1x128xf32, #tpu.memory_space<vmem>>, vector<1x128xf32>
    %63 = vector.broadcast %62 : vector<1x128xf32> to vector<2x128xf32>
    %64 = arith.addf %61, %63 : vector<2x128xf32>
    %65 = arith.negf %64 : vector<2x128xf32>
    %66 = math.exp %65 : vector<2x128xf32>
    %cst_46 = arith.constant 1.000000e+00 : f32
    %67 = vector.broadcast %cst_46 : f32 to vector<2x128xf32>
    %68 = arith.addf %67, %66 : vector<2x128xf32>
    %69 = arith.divf %67, %68 : vector<2x128xf32>
    %70 = vector.extract_strided_slice %69 {offsets = [0, 0], sizes = [2, 32], strides = [1, 1]} : vector<2x128xf32> to vector<2x32xf32>
    %71 = vector.extract_strided_slice %69 {offsets = [0, 32], sizes = [2, 32], strides = [1, 1]} : vector<2x128xf32> to vector<2x32xf32>
    %72 = vector.extract_strided_slice %69 {offsets = [0, 64], sizes = [2, 32], strides = [1, 1]} : vector<2x128xf32> to vector<2x32xf32>
    %cst_47 = arith.constant 2.000000e+00 : f32
    %73 = vector.broadcast %cst_47 : f32 to vector<2x32xf32>
    %74 = arith.mulf %73, %72 : vector<2x32xf32>
    %cst_48 = arith.constant 1.000000e+00 : f32
    %75 = vector.broadcast %cst_48 : f32 to vector<2x32xf32>
    %76 = arith.subf %74, %75 : vector<2x32xf32>
    %77 = vector.extract_strided_slice %69 {offsets = [0, 96], sizes = [2, 32], strides = [1, 1]} : vector<2x128xf32> to vector<2x32xf32>
    %78 = arith.mulf %71, %57 : vector<2x32xf32>
    %79 = arith.mulf %70, %76 : vector<2x32xf32>
    %80 = arith.addf %78, %79 : vector<2x32xf32>
    %81 = math.tanh %80 : vector<2x32xf32>
    %82 = arith.mulf %77, %81 : vector<2x32xf32>
    %c1_49 = arith.constant 1 : index
    %c0_50 = arith.constant 0 : index
    %c0_51 = arith.constant 0 : index
    %83 = vector.load %arg12[%c1_49, %c0_50, %c0_51] : memref<2x2x32xf32, #tpu.memory_space<vmem>>, vector<1x2x32xf32>
    %84 = vector.shape_cast %83 : vector<1x2x32xf32> to vector<2x32xf32>
    %85 = vector.shape_cast %82 : vector<2x32xf32> to vector<1x2x32xf32>
    tpu.vector_store %arg12[%c1_49, %c0_50, %c0_51], %85 {strides = array<i32>} : memref<2x2x32xf32, #tpu.memory_space<vmem>>, vector<1x2x32xf32>,
    %c1_52 = arith.constant 1 : index
    %c0_53 = arith.constant 0 : index
    %c0_54 = arith.constant 0 : index
    %86 = vector.load %arg13[%c1_52, %c0_53, %c0_54] : memref<2x2x32xf32, #tpu.memory_space<vmem>>, vector<1x2x32xf32>
    %87 = vector.shape_cast %86 : vector<1x2x32xf32> to vector<2x32xf32>
    %88 = vector.shape_cast %80 : vector<2x32xf32> to vector<1x2x32xf32>
    tpu.vector_store %arg13[%c1_52, %c0_53, %c0_54], %88 {strides = array<i32>} : memref<2x2x32xf32, #tpu.memory_space<vmem>>, vector<1x2x32xf32>,
    %c0_55 = arith.constant 0 : index
    %c0_56 = arith.constant 0 : index
    %c0_57 = arith.constant 0 : index
    %89 = vector.load %arg2[%c0_55, %c0_56, %c0_57] : memref<2x16x32xbf16, #tpu.memory_space<vmem>>, vector<1x16x32xbf16>
    %90 = vector.shape_cast %89 : vector<1x16x32xbf16> to vector<16x32xbf16>
    %c1_58 = arith.constant 1 : index
    %c0_59 = arith.constant 0 : index
    %c0_60 = arith.constant 0 : index
    %91 = vector.load %arg2[%c1_58, %c0_59, %c0_60] : memref<2x16x32xbf16, #tpu.memory_space<vmem>>, vector<1x16x32xbf16>
    %92 = vector.shape_cast %91 : vector<1x16x32xbf16> to vector<16x32xbf16>
    %93 = vector.extract_strided_slice %82 {offsets = [0, 0], sizes = [1, 32], strides = [1, 1]} : vector<2x32xf32> to vector<1x32xf32>
    %94 = arith.truncf %93 : vector<1x32xf32> to vector<1x32xbf16>
    %95 = tpu.transpose %90, [1, 0] : vector<16x32xbf16> -> vector<32x16xbf16>
    %cst_61 = arith.constant dense<0.000000e+00> : vector<1x16xf32>
    %96 = tpu.matmul %94, %95, %cst_61 {dimension_numbers = #tpu.dot_dimension_numbers<[1], [0], [0], [1], [0, 0, 1, 1], [], []>} : vector<1x32xbf16>, vector<32x16xbf16>, vector<1x16xf32> -> vector<1x16xf32>
    %97 = vector.extract_strided_slice %82 {offsets = [1, 0], sizes = [1, 32], strides = [1, 1]} : vector<2x32xf32> to vector<1x32xf32>
    %98 = arith.truncf %97 : vector<1x32xf32> to vector<1x32xbf16>
    %99 = tpu.transpose %92, [1, 0] : vector<16x32xbf16> -> vector<32x16xbf16>
    %cst_62 = arith.constant dense<0.000000e+00> : vector<1x16xf32>
    %100 = tpu.matmul %98, %99, %cst_62 {dimension_numbers = #tpu.dot_dimension_numbers<[1], [0], [0], [1], [0, 0, 1, 1], [], []>} : vector<1x32xbf16>, vector<32x16xbf16>, vector<1x16xf32> -> vector<1x16xf32>
    %101 = tpu.concatenate %96, %100 in 0 : vector<1x16xf32>, vector<1x16xf32> -> vector<2x16xf32>
    %cst_63 = arith.constant dense<0xFF800000> : vector<2xf32>
    %102 = vector.multi_reduction <maximumf>, %101, %cst_63 [1] : vector<2x16xf32> to vector<2xf32>
    %103 = vector.shape_cast %102 : vector<2xf32> to vector<2x1xf32>
    %104 = vector.broadcast %103 : vector<2x1xf32> to vector<2x16xf32>
    %105 = arith.subf %101, %104 : vector<2x16xf32>
    %106 = math.exp %105 : vector<2x16xf32>
    %cst_64 = arith.constant dense<0.000000e+00> : vector<2xf32>
    %107 = vector.multi_reduction <add>, %106, %cst_64 [1] : vector<2x16xf32> to vector<2xf32>
    %108 = vector.shape_cast %107 : vector<2xf32> to vector<2x1xf32>
    %109 = tpu.reciprocal %108 {approx = true} : vector<2x1xf32> -> vector<2x1xf32>
    %110 = vector.broadcast %109 : vector<2x1xf32> to vector<2x16xf32>
    %111 = arith.mulf %106, %110 : vector<2x16xf32>
    %112 = vector.extract_strided_slice %111 {offsets = [0, 0], sizes = [1, 16], strides = [1, 1]} : vector<2x16xf32> to vector<1x16xf32>
    %113 = arith.truncf %112 : vector<1x16xf32> to vector<1x16xbf16>
    %cst_65 = arith.constant dense<0.000000e+00> : vector<1x32xf32>
    %114 = tpu.matmul %113, %90, %cst_65 {dimension_numbers = #tpu.dot_dimension_numbers<[1], [0], [0], [1], [0, 0, 1, 1], [], []>} : vector<1x16xbf16>, vector<16x32xbf16>, vector<1x32xf32> -> vector<1x32xf32>
    %115 = vector.extract_strided_slice %111 {offsets = [1, 0], sizes = [1, 16], strides = [1, 1]} : vector<2x16xf32> to vector<1x16xf32>
    %116 = arith.truncf %115 : vector<1x16xf32> to vector<1x16xbf16>
    %cst_66 = arith.constant dense<0.000000e+00> : vector<1x32xf32>
    %117 = tpu.matmul %116, %92, %cst_66 {dimension_numbers = #tpu.dot_dimension_numbers<[1], [0], [0], [1], [0, 0, 1, 1], [], []>} : vector<1x16xbf16>, vector<16x32xbf16>, vector<1x32xf32> -> vector<1x32xf32>
    %118 = tpu.concatenate %114, %117 in 0 : vector<1x32xf32>, vector<1x32xf32> -> vector<2x32xf32>
    %119 = tpu.concatenate %118, %82 in 1 : vector<2x32xf32>, vector<2x32xf32> -> vector<2x64xf32>
    %120 = arith.truncf %119 : vector<2x64xf32> to vector<2x64xbf16>
    %c0_67 = arith.constant 0 : index
    %c0_68 = arith.constant 0 : index
    %121 = vector.load %arg9[%c0_67, %c0_68] : memref<64x128xbf16, #tpu.memory_space<vmem>>, vector<64x128xbf16>
    %cst_69 = arith.constant dense<0.000000e+00> : vector<2x128xf32>
    %122 = tpu.matmul %120, %121, %cst_69 {dimension_numbers = #tpu.dot_dimension_numbers<[1], [0], [0], [1], [0, 0, 1, 1], [], []>} : vector<2x64xbf16>, vector<64x128xbf16>, vector<2x128xf32> -> vector<2x128xf32>
    %c0_70 = arith.constant 0 : index
    %c0_71 = arith.constant 0 : index
    %123 = vector.load %arg10[%c0_70, %c0_71] : memref<1x128xf32, #tpu.memory_space<vmem>>, vector<1x128xf32>
    %124 = vector.broadcast %123 : vector<1x128xf32> to vector<2x128xf32>
    %125 = arith.addf %122, %124 : vector<2x128xf32>
    %c0_72 = arith.constant 0 : index
    %c0_73 = arith.constant 0 : index
    %126 = vector.load %arg11[%c0_72, %c0_73] : memref<2x128xf32, #tpu.memory_space<vmem>>, vector<2x128xf32>
    tpu.vector_store %arg11[%c0_72, %c0_73], %125 {strides = array<i32>} : memref<2x128xf32, #tpu.memory_space<vmem>>, vector<2x128xf32>,
    %c0_74 = arith.constant 0 : index
    %c0_75 = arith.constant 0 : index
    %127 = vector.load %arg14[%c0_74, %c0_75] : memref<2x16xf32, #tpu.memory_space<vmem>>, vector<2x16xf32>
    tpu.vector_store %arg14[%c0_74, %c0_75], %111 {strides = array<i32>} : memref<2x16xf32, #tpu.memory_space<vmem>>, vector<2x16xf32>,
    return
  }
}

</mosaic_0001>

<llo_original>
// kernel: decoder_forward.1
$region0: #{decoder_forward.1}
  #allocation0 [shape = 'u32[]', space=smem, size = 0x4, offset = 0x4, fixed_abs, tag = 'smem constant byte address 0x4 - core index']
  #allocation1 [shape = 'u32[144,128]{1,0:T(1,128)}', space=vmem, size = 0x12000, scoped, tag = 'internal scratch']
  #allocation2 [shape = 'f32[2,32]{1,0:T(2,128)}', space=vmem, size = 0x400, scoped, tag = 'scratch operand']
  #allocation3 [shape = 's32[2]{0}', space=sflag, size = 0x8, scoped, tag = 'scratch operand']
  #allocation14 [shape = 's32[]', space=sflag, size = 0x4, offset = 0, fixed_abs, tag = 'sflag constant byte address 0x0 - dummy sync flag']
  #allocation15 [shape = 's32[]', space=sflag, size = 0x4, offset = 0, fixed_abs, tag = 'sflag constant byte address 0x0 - dummy sync flag']
  %s0 = inlined_call_operand.vmem [shape: s32[2], index: 0, kind: input, shape index: {}]
  %s1 = inlined_call_operand.vmem [shape: f32[32,32], index: 1, kind: input, shape index: {}]
  %s2 = inlined_call_operand.vmem [shape: bf16[2,16,32], index: 2, kind: input, shape index: {}]
  %s3 = inlined_call_operand.vmem [shape: f32[2,2,32], index: 3, kind: input, shape index: {}, may-alias: {3,12}]
  %s4 = inlined_call_operand.vmem [shape: f32[2,2,32], index: 4, kind: input, shape index: {}, may-alias: {4,13}]
  %s5 = inlined_call_operand.vmem [shape: bf16[64,128], index: 5, kind: input, shape index: {}]
  %s6 = inlined_call_operand.vmem [shape: f32[1,128], index: 6, kind: input, shape index: {}]
  %s7 = inlined_call_operand.hbm [shape: bf16[64,128], index: 7, kind: input, shape index: {}]
  %s8 = inlined_call_operand.vmem [shape: f32[1,128], index: 8, kind: input, shape index: {}]
  %s9 = inlined_call_operand.hbm [shape: bf16[64,128], index: 9, kind: input, shape index: {}]
  %s10 = inlined_call_operand.vmem [shape: f32[1,128], index: 10, kind: input, shape index: {}]
  %s11 = inlined_call_operand.hbm [shape: f32[2,128], index: 11, kind: output, shape index: {0}]
  %s12 = inlined_call_operand.vmem [shape: f32[2,2,32], index: 12, kind: output, shape index: {1}, may-alias: {3,12}]
  %s13 = inlined_call_operand.vmem [shape: f32[2,2,32], index: 13, kind: output, shape index: {2}, may-alias: {4,13}]
  %s14 = inlined_call_operand.hbm [shape: f32[2,16], index: 14, kind: output, shape index: {3}]
  %15 = xla_tuple %s11, %s12, %s13, %s14
  %s16 = sld [smem:[#allocation0]]
  $region146: #{decoder_forward.1} parent=0
    _
  %s18 = ssub.s32 1, %s16
  %s19 = scalar_select 0, %s18, %s16
  $region1: #{decoder_forward.1} parent=0
    #allocation4 [shape = 'u8[512]{0}', space=smem, size = 0x200, scoped, tag = 'input window, operand 0, single buffered']
    #allocation5 [shape = 's32[1]{0}', space=sflag, size = 0x4, scoped, tag = 'scoped memory for decoder_forward.1']
    #allocation6 [shape = 's32[1]{0}', space=sflag, size = 0x4, scoped, tag = 'scoped memory for decoder_forward.1']
    #allocation7 [shape = 's32[1]{0}', space=sflag, size = 0x4, scoped, tag = 'scoped memory for decoder_forward.1']
    #allocation8 [shape = 'u8[16384]{0}', space=vmem, size = 0x4000, scoped, tag = 'input window, operand 7, single buffered']
    #allocation9 [shape = 'u8[16384]{0}', space=vmem, size = 0x4000, scoped, tag = 'input window, operand 9, single buffered']
    #allocation10 [shape = 's32[1]{0}', space=sflag, size = 0x4, scoped, tag = 'scoped memory for decoder_forward.1']
    #allocation11 [shape = 'u8[1024]{0}', space=vmem, size = 0x400, scoped, tag = 'output window, operand 0, single buffered']
    #allocation12 [shape = 'u8[1024]{0}', space=vmem, size = 0x400, scoped, tag = 'output window, operand 3, single buffered']
    #allocation13 [shape = 's32[1]{0}', space=sflag, size = 0x4, scoped, tag = 'scoped memory for decoder_forward.1']
    %20 = vsyncpa [#allocation7], 0
    %21 = vsyncpa [#allocation5], 0
    %22 = vsyncpa [#allocation10], 0
    %23 = vsyncpa [#allocation6], 0
    %24 = vsyncpa [#allocation13], 0
    // Predicated region
    $region2: #{decoder_forward.1} parent=1 // pred_check
      _
    $region3: #{decoder_forward.1} parent=1 // pred_check_branch
      %26 = sbr.rel (0) target = $region5
    $region4: #{decoder_forward.1} parent=1 // pred_region
      %s28 = ssub.s32 16, 16
      %29 = vsyncadd [#allocation7], %s28
      %s31 = sshll.u32 %s0, 4
      %s32 = int_to_ptr.vmem [resolvable:$true] %s31
      %34 = dma.vmem_to_smem %s32, 16, [#allocation4], [#allocation7]
    $region5: #{decoder_forward.1} parent=1 // pred_fallthru
      _
    // Predicated region
    $region6: #{decoder_forward.1} parent=1 // pred_check
      _
    $region7: #{decoder_forward.1} parent=1 // pred_check_branch
      %36 = sbr.rel (0) target = $region9
    $region8: #{decoder_forward.1} parent=1 // pred_region
      _
    $region9: #{decoder_forward.1} parent=1 // pred_fallthru
      _
    // Predicated region
    $region10: #{decoder_forward.1} parent=1 // pred_check
      _
    $region11: #{decoder_forward.1} parent=1 // pred_check_branch
      %38 = sbr.rel (0) target = $region13
    $region12: #{decoder_forward.1} parent=1 // pred_region
      _
    $region13: #{decoder_forward.1} parent=1 // pred_fallthru
      _
    // Predicated region
    $region14: #{decoder_forward.1} parent=1 // pred_check
      _
    $region15: #{decoder_forward.1} parent=1 // pred_check_branch
      %40 = sbr.rel (0) target = $region17
    $region16: #{decoder_forward.1} parent=1 // pred_region
      _
    $region17: #{decoder_forward.1} parent=1 // pred_fallthru
      _
    // Predicated region
    $region18: #{decoder_forward.1} parent=1 // pred_check
      _
    $region19: #{decoder_forward.1} parent=1 // pred_check_branch
      %42 = sbr.rel (0) target = $region21
    $region20: #{decoder_forward.1} parent=1 // pred_region
      _
    $region21: #{decoder_forward.1} parent=1 // pred_fallthru
      _
    // Predicated region
    $region22: #{decoder_forward.1} parent=1 // pred_check
      _
    $region23: #{decoder_forward.1} parent=1 // pred_check_branch
      %44 = sbr.rel (0) target = $region25
    $region24: #{decoder_forward.1} parent=1 // pred_region
      _
    $region25: #{decoder_forward.1} parent=1 // pred_fallthru
      _
    // Predicated region
    $region26: #{decoder_forward.1} parent=1 // pred_check
      _
    $region27: #{decoder_forward.1} parent=1 // pred_check_branch
      %46 = sbr.rel (0) target = $region29
    $region28: #{decoder_forward.1} parent=1 // pred_region
      %s48 = ssub.s32 512, 512
      %49 = vsyncadd [#allocation5], %s48
      %s50 = sshll.u32 [#allocation8], 4
      %s51 = int_to_ptr.vmem [resolvable:$true] %s50
      %56 = dma.hbm_to_vmem [thread:$0]  %s7, 512, %s51, [#allocation5], 64, 64, 4
    $region29: #{decoder_forward.1} parent=1 // pred_fallthru
      _
    // Predicated region
    $region30: #{decoder_forward.1} parent=1 // pred_check
      _
    $region31: #{decoder_forward.1} parent=1 // pred_check_branch
      %58 = sbr.rel (0) target = $region33
    $region32: #{decoder_forward.1} parent=1 // pred_region
      _
    $region33: #{decoder_forward.1} parent=1 // pred_fallthru
      _
    // Predicated region
    $region34: #{decoder_forward.1} parent=1 // pred_check
      _
    $region35: #{decoder_forward.1} parent=1 // pred_check_branch
      %60 = sbr.rel (0) target = $region37
    $region36: #{decoder_forward.1} parent=1 // pred_region
      %s62 = ssub.s32 512, 512
      %63 = vsyncadd [#allocation10], %s62
      %s64 = sshll.u32 [#allocation9], 4
      %s65 = int_to_ptr.vmem [resolvable:$true] %s64
      %70 = dma.hbm_to_vmem [thread:$0]  %s9, 512, %s65, [#allocation10], 64, 64, 4
    $region37: #{decoder_forward.1} parent=1 // pred_fallthru
      _
    // Predicated region
    $region38: #{decoder_forward.1} parent=1 // pred_check
      _
    $region39: #{decoder_forward.1} parent=1 // pred_check_branch
      %72 = sbr.rel (0) target = $region41
    $region40: #{decoder_forward.1} parent=1 // pred_region
      _
    $region41: #{decoder_forward.1} parent=1 // pred_fallthru
      _
    // Predicated region
    $region42: #{decoder_forward.1} parent=1 // pred_check
      _
    $region43: #{decoder_forward.1} parent=1 // pred_check_branch
      %74 = sbr.rel (0) target = $region45
    $region44: #{decoder_forward.1} parent=1 // pred_region
      %75 = dma.done [#allocation7], 16
    $region45: #{decoder_forward.1} parent=1 // pred_fallthru
      _
    // Predicated region
    $region46: #{decoder_forward.1} parent=1 // pred_check
      _
    $region47: #{decoder_forward.1} parent=1 // pred_check_branch
      %77 = sbr.rel (0) target = $region49
    $region48: #{decoder_forward.1} parent=1 // pred_region
      %78 = dma.done [#allocation5], 512
    $region49: #{decoder_forward.1} parent=1 // pred_fallthru
      _
    // Predicated region
    $region50: #{decoder_forward.1} parent=1 // pred_check
      _
    $region51: #{decoder_forward.1} parent=1 // pred_check_branch
      %80 = sbr.rel (0) target = $region53
    $region52: #{decoder_forward.1} parent=1 // pred_region
      %81 = dma.done [#allocation10], 512
    $region53: #{decoder_forward.1} parent=1 // pred_fallthru
      _
    %82 = sfence
    %s84 = sld [smem:[#allocation4]]
    %s85 = scalar_lea.vmem %s1, %s84
    %p87 = scmp.lt.u32.totalorder 1, 8
    %p88 = pneg %p87
    // Predicated region
    $region54: #{decoder_forward.1} parent=1 // pred_check
      _
    $region55: #{decoder_forward.1} parent=1 // pred_check_branch
      %90 = sbr.rel (%p87) target = $region57
    $region56: #{decoder_forward.1} parent=1 // pred_region
      %s105 = sand.u32 1, 7
      %p106 = scmp.eq.s32.totalorder %s105, 0
      %p107 = pneg %p106
      // Predicated region
      $region69: #{decoder_forward.1} parent=56 // pred_check
        _
      $region70: #{decoder_forward.1} parent=56 // pred_check_branch
        %109 = sbr.rel (%p106) target = $region72
      $region71: #{decoder_forward.1} parent=56 // pred_region
        %s110 = sand.u32 1, 7
        %s111 = ssub.s32 1, %s110
        %s112 = scalar_lea.vmem %s85, %s111
        %s113 = ssub.s32 1, %s110
        %s114 = scalar_lea.vmem [#allocation2], %s113
        %s115 = sshllo.u32 0, %s110
        loop: start=0, step=1, limit=1
        $region73: #{decoder_forward.1} parent=71 // loop_pre_header
          _
        $region74: #{decoder_forward.1} parent=71 // loop_header
          %s117 = sphi 0, %s121
          %p118 = scmp.ge.s32.totalorder %s117, 1
          %s122 = sphi %s112, %s112
          %s123 = sphi %s114, %s114
        $region75: #{decoder_forward.1} parent=71 // loop_header_branch
          %120 = sbr.rel (%p118) target = $region79
        $region76: #{decoder_forward.1} parent=71 // loop_body
          %v124 = vld [vmem:[%s122] sm:%s115]
          %125 = vst [vmem:[%s123] sm:%s115] %v124
        $region77: #{decoder_forward.1} parent=71 // loop_footer
          %s121 = sadd.s32 1, %s117
        $region78: #{decoder_forward.1} parent=71 // loop_footer_branch
          %116 = sbr.rel target = $region74
        $region79: #{decoder_forward.1} parent=71 // loop_exit
          _
      $region72: #{decoder_forward.1} parent=56 // pred_fallthru
        _
    $region57: #{decoder_forward.1} parent=1 // pred_fallthru
      _
    // Predicated region
    $region58: #{decoder_forward.1} parent=1 // pred_check
      %p91 = pneg %p87
    $region59: #{decoder_forward.1} parent=1 // pred_check_branch
      %93 = sbr.rel (%p91) target = $region61
    $region60: #{decoder_forward.1} parent=1 // pred_region
      %s94 = sshllo.u32 0, 1
      loop: start=0, step=1, limit=1
      $region62: #{decoder_forward.1} parent=60 // loop_pre_header
        _
      $region63: #{decoder_forward.1} parent=60 // loop_header
        %s96 = sphi 0, %s100
        %p97 = scmp.ge.s32.totalorder %s96, 1
        %s101 = sphi %s85, %s85
        %s102 = sphi [#allocation2], [#allocation2]
      $region64: #{decoder_forward.1} parent=60 // loop_header_branch
        %99 = sbr.rel (%p97) target = $region68
      $region65: #{decoder_forward.1} parent=60 // loop_body
        %v103 = vld [vmem:[%s101] sm:%s94]
        %104 = vst [vmem:[%s102] sm:%s94] %v103
      $region66: #{decoder_forward.1} parent=60 // loop_footer
        %s100 = sadd.s32 1, %s96
      $region67: #{decoder_forward.1} parent=60 // loop_footer_branch
        %95 = sbr.rel target = $region63
      $region68: #{decoder_forward.1} parent=60 // loop_exit
        _
    $region61: #{decoder_forward.1} parent=1 // pred_fallthru
      _
    // Predicated region
    $region80: #{decoder_forward.1} parent=1 // pred_check
      _
    $region81: #{decoder_forward.1} parent=1 // pred_check_branch
      %128 = sbr.rel (0) target = $region83
    $region82: #{decoder_forward.1} parent=1 // pred_region
      %129 = vsyncadd [#allocation3], 16
    $region83: #{decoder_forward.1} parent=1 // pred_fallthru
      _
    %s130 = sld [smem:[#allocation4 + $0x1]]
    %s131 = scalar_lea.vmem %s1, %s130
    %s132 = scalar_lea.vmem [#allocation2], 1
    %s133 = scalar_lea.sflag [#allocation3], 1
    %p135 = scmp.lt.u32.totalorder 1, 8
    %p136 = pneg %p135
    // Predicated region
    $region84: #{decoder_forward.1} parent=1 // pred_check
      _
    $region85: #{decoder_forward.1} parent=1 // pred_check_branch
      %138 = sbr.rel (%p135) target = $region87
    $region86: #{decoder_forward.1} parent=1 // pred_region
      %s153 = sand.u32 1, 7
      %p154 = scmp.eq.s32.totalorder %s153, 0
      %p155 = pneg %p154
      // Predicated region
      $region99: #{decoder_forward.1} parent=86 // pred_check
        _
      $region100: #{decoder_forward.1} parent=86 // pred_check_branch
        %157 = sbr.rel (%p154) target = $region102
      $region101: #{decoder_forward.1} parent=86 // pred_region
        %s158 = sand.u32 1, 7
        %s159 = ssub.s32 1, %s158
        %s160 = scalar_lea.vmem %s131, %s159
        %s161 = ssub.s32 1, %s158
        %s162 = scalar_lea.vmem %s132, %s161 [#allocation2]
        %s163 = sshllo.u32 0, %s158
        loop: start=0, step=1, limit=1
        $region103: #{decoder_forward.1} parent=101 // loop_pre_header
          _
        $region104: #{decoder_forward.1} parent=101 // loop_header
          %s165 = sphi 0, %s169
          %p166 = scmp.ge.s32.totalorder %s165, 1
          %s170 = sphi %s160, %s160
          %s171 = sphi %s162, %s162
        $region105: #{decoder_forward.1} parent=101 // loop_header_branch
          %168 = sbr.rel (%p166) target = $region109
        $region106: #{decoder_forward.1} parent=101 // loop_body
          %v172 = vld [vmem:[%s170] sm:%s163]
          %173 = vst [vmem:[%s171] sm:%s163] %v172
        $region107: #{decoder_forward.1} parent=101 // loop_footer
          %s169 = sadd.s32 1, %s165
        $region108: #{decoder_forward.1} parent=101 // loop_footer_branch
          %164 = sbr.rel target = $region104
        $region109: #{decoder_forward.1} parent=101 // loop_exit
          _
      $region102: #{decoder_forward.1} parent=86 // pred_fallthru
        _
    $region87: #{decoder_forward.1} parent=1 // pred_fallthru
      _
    // Predicated region
    $region88: #{decoder_forward.1} parent=1 // pred_check
      %p139 = pneg %p135
    $region89: #{decoder_forward.1} parent=1 // pred_check_branch
      %141 = sbr.rel (%p139) target = $region91
    $region90: #{decoder_forward.1} parent=1 // pred_region
      %s142 = sshllo.u32 0, 1
      loop: start=0, step=1, limit=1
      $region92: #{decoder_forward.1} parent=90 // loop_pre_header
        _
      $region93: #{decoder_forward.1} parent=90 // loop_header
        %s144 = sphi 0, %s148
        %p145 = scmp.ge.s32.totalorder %s144, 1
        %s149 = sphi %s131, %s131
        %s150 = sphi %s132, %s132
      $region94: #{decoder_forward.1} parent=90 // loop_header_branch
        %147 = sbr.rel (%p145) target = $region98
      $region95: #{decoder_forward.1} parent=90 // loop_body
        %v151 = vld [vmem:[%s149] sm:%s142]
        %152 = vst [vmem:[%s150] sm:%s142] %v151
      $region96: #{decoder_forward.1} parent=90 // loop_footer
        %s148 = sadd.s32 1, %s144
      $region97: #{decoder_forward.1} parent=90 // loop_footer_branch
        %143 = sbr.rel target = $region93
      $region98: #{decoder_forward.1} parent=90 // loop_exit
        _
    $region91: #{decoder_forward.1} parent=1 // pred_fallthru
      _
    // Predicated region
    $region110: #{decoder_forward.1} parent=1 // pred_check
      _
    $region111: #{decoder_forward.1} parent=1 // pred_check_branch
      %176 = sbr.rel (0) target = $region113
    $region112: #{decoder_forward.1} parent=1 // pred_region
      %177 = vsyncadd %s133, 16
    $region113: #{decoder_forward.1} parent=1 // pred_fallthru
      _
    %s178 = smul.u32 1, 1
    %s179 = sshll.u32 %s178, 4
    %180 = dma.done [#allocation3], %s179
    %s181 = sshll.u32 %s178, 4
    %182 = dma.done %s133, %s181
    %v183 = vld [vmem:[#allocation2] sm:$0x3]
    %v184 = vld [vmem:[%s3] sm:$0x3]
    %v185 = vld [vmem:[%s4] sm:$0x3]
    %187 = vrot.lane.b32.xlu0 %v184, 32
    %v188 = vpop.permute.xlu0 %187
    %vm190 = vcmask 261120
    %v191 = vsel %vm190, %v183, %v188
    %v192 = vpack.c.bf16 %v191, %v191
    %v193 = vld [vmem:[%s5] sm:$0xf]
    %v194 = vld [vmem:[%s5 + $0x4] sm:$0xf]
    %v195 = vld [vmem:[%s5 + $0x8] sm:$0xf]
    %v196 = vld [vmem:[%s5 + $0xc] sm:$0xf]
    %v197 = vld [vmem:[%s5 + $0x10] sm:$0xf]
    %v198 = vld [vmem:[%s5 + $0x14] sm:$0xf]
    %v199 = vld [vmem:[%s5 + $0x18] sm:$0xf]
    %v200 = vld [vmem:[%s5 + $0x1c] sm:$0xf]
    %v201 = vld [vmem:[%s6] sm:$0x1]
    %v203 = vlaneseq
    %v204 = vshrl.u32 %v203, 7
    %v205 = vsub.s32 0, %v204
    %v206 = vrot.slane %v201, %v205
    %v216 = vunpack.c.l.b16 %v193
    %v217 = vunpack.c.l.b16 %v194
    %v218 = vunpack.c.l.b16 %v195
    %v219 = vunpack.c.l.b16 %v196
    %v220 = vunpack.c.l.b16 %v197
    %v221 = vunpack.c.l.b16 %v198
    %v222 = vunpack.c.l.b16 %v199
    %v223 = vunpack.c.l.b16 %v200
    %v224 = vpack.c.b16 %v217, %v216
    %v225 = vpack.c.b16 %v219, %v218
    %v226 = vpack.c.b16 %v221, %v220
    %v227 = vpack.c.b16 %v223, %v222
    %vm232 = vcmask 523264
    %v234 = vsel %vm232, %v192, 0
    %236 = vmatprep.subr.bf16.mxu0 0
    %237 = vmatpush1.bf16.msra.mxu0 %v224
    %238 = vmatprep.subr.bf16.mxu0 0
    %239 = vmatpush1.bf16.msra.mxu0 %v225
    %240 = vmatprep.subr.bf16.mxu0 0
    %241 = vmatpush1.bf16.msra.mxu0 %v226
    %242 = vmatprep.subr.bf16.mxu0 0
    %243 = vmatpush1.bf16.msra.mxu0 %v227
    %244 = vmatprep.subr.bf16.mxu0 0
    %245 = vmatpush1.bf16.msra.mxu0 0
    %246 = vmatprep.subr.bf16.mxu0 0
    %247 = vmatpush1.bf16.msra.mxu0 0
    %248 = vmatprep.subr.bf16.mxu0 0
    %249 = vmatpush1.bf16.msra.mxu0 0
    %250 = vmatprep.subr.bf16.mxu0 0
    %251 = vmatpush1.bf16.msra.mxu0 0
    %252 = vmatprep.subr.bf16.mxu0 0
    %253 = vmatpush1.bf16.msra.mxu0 0
    %254 = vmatprep.subr.bf16.mxu0 0
    %255 = vmatpush1.bf16.msra.mxu0 0
    %256 = vmatprep.subr.bf16.mxu0 0
    %257 = vmatpush1.bf16.msra.mxu0 0
    %258 = vmatprep.subr.bf16.mxu0 0
    %259 = vmatpush1.bf16.msra.mxu0 0
    %260 = vmatprep.subr.bf16.mxu0 0
    %261 = vmatpush1.bf16.msra.mxu0 0
    %262 = vmatprep.subr.bf16.mxu0 0
    %263 = vmatpush1.bf16.msra.mxu0 0
    %264 = vmatprep.subr.bf16.mxu0 0
    %265 = vmatpush1.bf16.msra.mxu0 0
    %266 = vmatprep.subr.bf16.mxu0 0
    %267 = vmatpush1.bf16.msra.mxu0 0
    %268 = vmatprep.mubr.bf16.mxu0 0
    %269 = vmatmul.mubr.bf16.gmra.mrb[0].mxu0 %v234
    %v270 = vpop.f32.mrb[0].mxu0
    %v271 = vadd.f32 %v206, %v270
    %v272 = vpop.f32.mrb[0].mxu0
    %v273 = vpop.f32.mrb[0].mxu0
    %v274 = vpop.f32.mrb[0].mxu0
    %275 = vdwg.mxu0
    %v276 = vxor.u32 %v271, 2147483648
    %v277 = vmul.f32 %v276, 1.442695
    %v278 = vpow.pop %v277
    %v279 = vadd.f32 %v278, 1.0
    %v280 = vrcp.pop %v279
    %v281 = vmul.f32 1.0, %v280
    %v282 = vmul.f32 %v281, 2.0
    %v283 = vsub.f32 %v282, 1.0
    %285 = vrot.lane.b32.xlu0 %v185, 32
    %v286 = vpop.permute.xlu0 %285
    %v288 = vmul.f32 %v281, %v286
    %290 = vrot.lane.b32.xlu0 %v283, 64
    %v291 = vpop.permute.xlu0 %290
    %v293 = vmul.f32 %v281, %v291
    %295 = vrot.lane.b32.xlu0 %v293, 32
    %v296 = vpop.permute.xlu0 %295
    %v298 = vadd.f32 %v288, %v296
    %v299 = vtanh.pop %v298
    %301 = vrot.lane.b32.xlu0 %v299, 64
    %v302 = vpop.permute.xlu0 %301
    %v304 = vmul.f32 %v281, %v302
    %306 = vrot.lane.b32.xlu0 %v304, 32
    %v307 = vpop.permute.xlu0 %306
    %vm309 = vcmask 254976
    %310 = vst.msk [vmem:[%s12] sm:$0x3] %vm309, %v307
    %312 = vrot.lane.b32.xlu0 %v298, 96
    %v313 = vpop.permute.xlu0 %312
    %315 = vst.msk [vmem:[%s13] sm:$0x3] %vm309, %v313
    %s316 = scalar_lea.vmem %s3, 2
    %v317 = vld [vmem:[%s316] sm:$0x3]
    %s318 = scalar_lea.vmem %s4, 2
    %v319 = vld [vmem:[%s318] sm:$0x3]
    %321 = vrot.lane.b32.xlu0 %v317, 32
    %v322 = vpop.permute.xlu0 %321
    %v324 = vsel %vm190, %v307, %v322
    %v325 = vpack.c.bf16 %v324, %v324
    %v326 = vld [vmem:[#allocation8] sm:$0xf]
    %v327 = vld [vmem:[#allocation8 + $0x4] sm:$0xf]
    %v328 = vld [vmem:[#allocation8 + $0x8] sm:$0xf]
    %v329 = vld [vmem:[#allocation8 + $0xc] sm:$0xf]
    %v330 = vld [vmem:[#allocation8 + $0x10] sm:$0xf]
    %v331 = vld [vmem:[#allocation8 + $0x14] sm:$0xf]
    %v332 = vld [vmem:[#allocation8 + $0x18] sm:$0xf]
    %v333 = vld [vmem:[#allocation8 + $0x1c] sm:$0xf]
    %v334 = vld [vmem:[%s8] sm:$0x1]
    %v336 = vlaneseq
    %v337 = vshrl.u32 %v336, 7
    %v338 = vsub.s32 0, %v337
    %v339 = vrot.slane %v334, %v338
    %v349 = vunpack.c.l.b16 %v326
    %v350 = vunpack.c.l.b16 %v327
    %v351 = vunpack.c.l.b16 %v328
    %v352 = vunpack.c.l.b16 %v329
    %v353 = vunpack.c.l.b16 %v330
    %v354 = vunpack.c.l.b16 %v331
    %v355 = vunpack.c.l.b16 %v332
    %v356 = vunpack.c.l.b16 %v333
    %v357 = vpack.c.b16 %v350, %v349
    %v358 = vpack.c.b16 %v352, %v351
    %v359 = vpack.c.b16 %v354, %v353
    %v360 = vpack.c.b16 %v356, %v355
    %v366 = vsel %vm232, %v325, 0
    %368 = vmatprep.subr.bf16.mxu0 0
    %369 = vmatpush1.bf16.msra.mxu0 %v357
    %370 = vmatprep.subr.bf16.mxu0 0
    %371 = vmatpush1.bf16.msra.mxu0 %v358
    %372 = vmatprep.subr.bf16.mxu0 0
    %373 = vmatpush1.bf16.msra.mxu0 %v359
    %374 = vmatprep.subr.bf16.mxu0 0
    %375 = vmatpush1.bf16.msra.mxu0 %v360
    %376 = vmatprep.subr.bf16.mxu0 0
    %377 = vmatpush1.bf16.msra.mxu0 0
    %378 = vmatprep.subr.bf16.mxu0 0
    %379 = vmatpush1.bf16.msra.mxu0 0
    %380 = vmatprep.subr.bf16.mxu0 0
    %381 = vmatpush1.bf16.msra.mxu0 0
    %382 = vmatprep.subr.bf16.mxu0 0
    %383 = vmatpush1.bf16.msra.mxu0 0
    %384 = vmatprep.subr.bf16.mxu0 0
    %385 = vmatpush1.bf16.msra.mxu0 0
    %386 = vmatprep.subr.bf16.mxu0 0
    %387 = vmatpush1.bf16.msra.mxu0 0
    %388 = vmatprep.subr.bf16.mxu0 0
    %389 = vmatpush1.bf16.msra.mxu0 0
    %390 = vmatprep.subr.bf16.mxu0 0
    %391 = vmatpush1.bf16.msra.mxu0 0
    %392 = vmatprep.subr.bf16.mxu0 0
    %393 = vmatpush1.bf16.msra.mxu0 0
    %394 = vmatprep.subr.bf16.mxu0 0
    %395 = vmatpush1.bf16.msra.mxu0 0
    %396 = vmatprep.subr.bf16.mxu0 0
    %397 = vmatpush1.bf16.msra.mxu0 0
    %398 = vmatprep.subr.bf16.mxu0 0
    %399 = vmatpush1.bf16.msra.mxu0 0
    %400 = vmatprep.mubr.bf16.mxu0 0
    %401 = vmatmul.mubr.bf16.gmra.mrb[0].mxu0 %v366
    %v402 = vpop.f32.mrb[0].mxu0
    %v403 = vadd.f32 %v339, %v402
    %v404 = vpop.f32.mrb[0].mxu0
    %v405 = vpop.f32.mrb[0].mxu0
    %v406 = vpop.f32.mrb[0].mxu0
    %407 = vdwg.mxu0
    %v408 = vxor.u32 %v403, 2147483648
    %v409 = vmul.f32 %v408, 1.442695
    %v410 = vpow.pop %v409
    %v411 = vadd.f32 %v410, 1.0
    %v412 = vrcp.pop %v411
    %v413 = vmul.f32 1.0, %v412
    %v414 = vmul.f32 %v413, 2.0
    %v415 = vsub.f32 %v414, 1.0
    %417 = vrot.lane.b32.xlu0 %v319, 32
    %v418 = vpop.permute.xlu0 %417
    %v420 = vmul.f32 %v413, %v418
    %422 = vrot.lane.b32.xlu0 %v415, 64
    %v423 = vpop.permute.xlu0 %422
    %v425 = vmul.f32 %v413, %v423
    %427 = vrot.lane.b32.xlu0 %v425, 32
    %v428 = vpop.permute.xlu0 %427
    %v430 = vadd.f32 %v420, %v428
    %v431 = vtanh.pop %v430
    %433 = vrot.lane.b32.xlu0 %v431, 64
    %v434 = vpop.permute.xlu0 %433
    %v436 = vmul.f32 %v413, %v434
    %438 = vrot.lane.b32.xlu0 %v436, 32
    %v439 = vpop.permute.xlu0 %438
    %s441 = scalar_lea.vmem %s12, 2
    %442 = vst.msk [vmem:[%s441] sm:$0x3] %vm309, %v439
    %444 = vrot.lane.b32.xlu0 %v430, 96
    %v445 = vpop.permute.xlu0 %444
    %s447 = scalar_lea.vmem %s13, 2
    %448 = vst.msk [vmem:[%s447] sm:$0x3] %vm309, %v445
    %v449 = vld [vmem:[%s2] sm:$0xf]
    %v450 = vld [vmem:[%s2 + $0x4] sm:$0xf]
    %s451 = scalar_lea.vmem %s2, 8
    %v452 = vld [vmem:[%s451] sm:$0xf]
    %v453 = vld [vmem:[%s451 + $0x4] sm:$0xf]
    %v454 = vpack.c.bf16 %v436, %v436
    %456 = vrot.lane.b32.xlu0 %v454, 32
    %v457 = vpop.permute.xlu0 %456
    %v460 = vunpack.c.l.b16 %v449
    %v461 = vunpack.c.l.b16 %v450
    %v462 = vpack.c.b16 %v461, %v460
    %v464 = vsel %vm190, %v457, 0
    %v467 = vsel %vm190, %v462, 0
    %469 = vmatprep.subr.bf16.mxu0 0
    %470 = vmatpush1.bf16.xpose.msra.mxu0 %v467
    %471 = vmatprep.subr.bf16.mxu0 0
    %472 = vmatpush1.bf16.xpose.msra.mxu0 0
    %473 = vmatprep.subr.bf16.mxu0 0
    %474 = vmatpush1.bf16.xpose.msra.mxu0 0
    %475 = vmatprep.subr.bf16.mxu0 0
    %476 = vmatpush1.bf16.xpose.msra.mxu0 0
    %477 = vmatprep.subr.bf16.mxu0 0
    %478 = vmatpush1.bf16.xpose.msra.mxu0 0
    %479 = vmatprep.subr.bf16.mxu0 0
    %480 = vmatpush1.bf16.xpose.msra.mxu0 0
    %481 = vmatprep.subr.bf16.mxu0 0
    %482 = vmatpush1.bf16.xpose.msra.mxu0 0
    %483 = vmatprep.subr.bf16.mxu0 0
    %484 = vmatpush1.bf16.xpose.msra.mxu0 0
    %485 = vmatprep.subr.bf16.mxu0 0
    %486 = vmatpush1.bf16.xpose.msra.mxu0 0
    %487 = vmatprep.subr.bf16.mxu0 0
    %488 = vmatpush1.bf16.xpose.msra.mxu0 0
    %489 = vmatprep.subr.bf16.mxu0 0
    %490 = vmatpush1.bf16.xpose.msra.mxu0 0
    %491 = vmatprep.subr.bf16.mxu0 0
    %492 = vmatpush1.bf16.xpose.msra.mxu0 0
    %493 = vmatprep.subr.bf16.mxu0 0
    %494 = vmatpush1.bf16.xpose.msra.mxu0 0
    %495 = vmatprep.subr.bf16.mxu0 0
    %496 = vmatpush1.bf16.xpose.msra.mxu0 0
    %497 = vmatprep.subr.bf16.mxu0 0
    %498 = vmatpush1.bf16.xpose.msra.mxu0 0
    %499 = vmatprep.subr.bf16.mxu0 0
    %500 = vmatpush1.bf16.xpose.msra.mxu0 0
    %501 = vmatprep.mubr.bf16.mxu0 0
    %502 = vmatmul.mubr.bf16.gmra.mrb[0].mxu0 %v464
    %v503 = vpop.f32.mrb[0].mxu0
    %v504 = vadd.f32 0.0, %v503
    %v505 = vpop.f32.mrb[0].mxu0
    %v506 = vpop.f32.mrb[0].mxu0
    %v507 = vpop.f32.mrb[0].mxu0
    %508 = vdwg.mxu0
    %v510 = vshrl.u32 %v454, 16
    %512 = vrot.lane.b32.xlu0 %v510, 32
    %v513 = vpop.permute.xlu0 %512
    %v516 = vunpack.c.l.b16 %v452
    %v517 = vunpack.c.l.b16 %v453
    %v518 = vpack.c.b16 %v517, %v516
    %v520 = vsel %vm190, %v513, 0
    %v523 = vsel %vm190, %v518, 0
    %525 = vmatprep.subr.bf16.mxu0 0
    %526 = vmatpush1.bf16.xpose.msra.mxu0 %v523
    %527 = vmatprep.subr.bf16.mxu0 0
    %528 = vmatpush1.bf16.xpose.msra.mxu0 0
    %529 = vmatprep.subr.bf16.mxu0 0
    %530 = vmatpush1.bf16.xpose.msra.mxu0 0
    %531 = vmatprep.subr.bf16.mxu0 0
    %532 = vmatpush1.bf16.xpose.msra.mxu0 0
    %533 = vmatprep.subr.bf16.mxu0 0
    %534 = vmatpush1.bf16.xpose.msra.mxu0 0
    %535 = vmatprep.subr.bf16.mxu0 0
    %536 = vmatpush1.bf16.xpose.msra.mxu0 0
    %537 = vmatprep.subr.bf16.mxu0 0
    %538 = vmatpush1.bf16.xpose.msra.mxu0 0
    %539 = vmatprep.subr.bf16.mxu0 0
    %540 = vmatpush1.bf16.xpose.msra.mxu0 0
    %541 = vmatprep.subr.bf16.mxu0 0
    %542 = vmatpush1.bf16.xpose.msra.mxu0 0
    %543 = vmatprep.subr.bf16.mxu0 0
    %544 = vmatpush1.bf16.xpose.msra.mxu0 0
    %545 = vmatprep.subr.bf16.mxu0 0
    %546 = vmatpush1.bf16.xpose.msra.mxu0 0
    %547 = vmatprep.subr.bf16.mxu0 0
    %548 = vmatpush1.bf16.xpose.msra.mxu0 0
    %549 = vmatprep.subr.bf16.mxu0 0
    %550 = vmatpush1.bf16.xpose.msra.mxu0 0
    %551 = vmatprep.subr.bf16.mxu0 0
    %552 = vmatpush1.bf16.xpose.msra.mxu0 0
    %553 = vmatprep.subr.bf16.mxu0 0
    %554 = vmatpush1.bf16.xpose.msra.mxu0 0
    %555 = vmatprep.subr.bf16.mxu0 0
    %556 = vmatpush1.bf16.xpose.msra.mxu0 0
    %557 = vmatprep.mubr.bf16.mxu0 0
    %558 = vmatmul.mubr.bf16.gmra.mrb[0].mxu0 %v520
    %v559 = vpop.f32.mrb[0].mxu0
    %v560 = vadd.f32 0.0, %v559
    %v561 = vpop.f32.mrb[0].mxu0
    %v562 = vpop.f32.mrb[0].mxu0
    %v563 = vpop.f32.mrb[0].mxu0
    %564 = vdwg.mxu0
    %v566 = vrot.slane %v560, 7
    %vm568 = vcmask 1040384
    %v569 = vsel %vm568, %v504, %v566
    %vm570 = vcmask 123904
    %v571 = vsel %vm570, %v569, -inf
    %572 = vmax.xlane.f32.xlu0 %v571
    %v573 = vpop.xlane.xlu0 %572
    %v574 = vsub.f32 %v569, %v573
    %v575 = vmul.f32 %v574, 1.442695
    %v576 = vpow.pop %v575
    %v577 = vsel %vm570, %v576, 0.0
    %578 = vadd.xlane.f32.xlu0 %v577
    %v579 = vpop.xlane.xlu0 %578
    %v580 = vrcp.pop %v579
    %v581 = vmul.f32 %v576, %v580
    %v582 = vpack.c.bf16 %v581, %v581
    %vm584 = vcmask 130048
    %v586 = vsel %vm584, %v582, 0
    %588 = vmatprep.subr.bf16.mxu0 0
    %589 = vmatpush1.bf16.msra.mxu0 %v462
    %590 = vmatprep.subr.bf16.mxu0 0
    %591 = vmatpush1.bf16.msra.mxu0 0
    %592 = vmatprep.subr.bf16.mxu0 0
    %593 = vmatpush1.bf16.msra.mxu0 0
    %594 = vmatprep.subr.bf16.mxu0 0
    %595 = vmatpush1.bf16.msra.mxu0 0
    %596 = vmatprep.subr.bf16.mxu0 0
    %597 = vmatpush1.bf16.msra.mxu0 0
    %598 = vmatprep.subr.bf16.mxu0 0
    %599 = vmatpush1.bf16.msra.mxu0 0
    %600 = vmatprep.subr.bf16.mxu0 0
    %601 = vmatpush1.bf16.msra.mxu0 0
    %602 = vmatprep.subr.bf16.mxu0 0
    %603 = vmatpush1.bf16.msra.mxu0 0
    %604 = vmatprep.subr.bf16.mxu0 0
    %605 = vmatpush1.bf16.msra.mxu0 0
    %606 = vmatprep.subr.bf16.mxu0 0
    %607 = vmatpush1.bf16.msra.mxu0 0
    %608 = vmatprep.subr.bf16.mxu0 0
    %609 = vmatpush1.bf16.msra.mxu0 0
    %610 = vmatprep.subr.bf16.mxu0 0
    %611 = vmatpush1.bf16.msra.mxu0 0
    %612 = vmatprep.subr.bf16.mxu0 0
    %613 = vmatpush1.bf16.msra.mxu0 0
    %614 = vmatprep.subr.bf16.mxu0 0
    %615 = vmatpush1.bf16.msra.mxu0 0
    %616 = vmatprep.subr.bf16.mxu0 0
    %617 = vmatpush1.bf16.msra.mxu0 0
    %618 = vmatprep.subr.bf16.mxu0 0
    %619 = vmatpush1.bf16.msra.mxu0 0
    %620 = vmatprep.mubr.bf16.mxu0 0
    %621 = vmatmul.mubr.bf16.gmra.mrb[0].mxu0 %v586
    %v622 = vpop.f32.mrb[0].mxu0
    %v623 = vadd.f32 0.0, %v622
    %v624 = vpop.f32.mrb[0].mxu0
    %v625 = vpop.f32.mrb[0].mxu0
    %v626 = vpop.f32.mrb[0].mxu0
    %627 = vdwg.mxu0
    %v628 = vshrl.u32 %v582, 16
    %v632 = vsel %vm584, %v628, 0
    %634 = vmatprep.subr.bf16.mxu0 0
    %635 = vmatpush1.bf16.msra.mxu0 %v518
    %636 = vmatprep.subr.bf16.mxu0 0
    %637 = vmatpush1.bf16.msra.mxu0 0
    %638 = vmatprep.subr.bf16.mxu0 0
    %639 = vmatpush1.bf16.msra.mxu0 0
    %640 = vmatprep.subr.bf16.mxu0 0
    %641 = vmatpush1.bf16.msra.mxu0 0
    %642 = vmatprep.subr.bf16.mxu0 0
    %643 = vmatpush1.bf16.msra.mxu0 0
    %644 = vmatprep.subr.bf16.mxu0 0
    %645 = vmatpush1.bf16.msra.mxu0 0
    %646 = vmatprep.subr.bf16.mxu0 0
    %647 = vmatpush1.bf16.msra.mxu0 0
    %648 = vmatprep.subr.bf16.mxu0 0
    %649 = vmatpush1.bf16.msra.mxu0 0
    %650 = vmatprep.subr.bf16.mxu0 0
    %651 = vmatpush1.bf16.msra.mxu0 0
    %652 = vmatprep.subr.bf16.mxu0 0
    %653 = vmatpush1.bf16.msra.mxu0 0
    %654 = vmatprep.subr.bf16.mxu0 0
    %655 = vmatpush1.bf16.msra.mxu0 0
    %656 = vmatprep.subr.bf16.mxu0 0
    %657 = vmatpush1.bf16.msra.mxu0 0
    %658 = vmatprep.subr.bf16.mxu0 0
    %659 = vmatpush1.bf16.msra.mxu0 0
    %660 = vmatprep.subr.bf16.mxu0 0
    %661 = vmatpush1.bf16.msra.mxu0 0
    %662 = vmatprep.subr.bf16.mxu0 0
    %663 = vmatpush1.bf16.msra.mxu0 0
    %664 = vmatprep.subr.bf16.mxu0 0
    %665 = vmatpush1.bf16.msra.mxu0 0
    %666 = vmatprep.mubr.bf16.mxu0 0
    %667 = vmatmul.mubr.bf16.gmra.mrb[0].mxu0 %v632
    %v668 = vpop.f32.mrb[0].mxu0
    %v669 = vadd.f32 0.0, %v668
    %v670 = vpop.f32.mrb[0].mxu0
    %v671 = vpop.f32.mrb[0].mxu0
    %v672 = vpop.f32.mrb[0].mxu0
    %673 = vdwg.mxu0
    %v675 = vrot.slane %v669, 7
    %v677 = vsel %vm568, %v623, %v675
    %678 = vrot.lane.b32.xlu0 %v436, 64
    %v679 = vpop.permute.xlu0 %678
    %v681 = vsel %vm190, %v677, %v679
    %v682 = vpack.c.bf16 %v681, %v681
    %v683 = vld [vmem:[#allocation9] sm:$0xf]
    %v684 = vld [vmem:[#allocation9 + $0x4] sm:$0xf]
    %v685 = vld [vmem:[#allocation9 + $0x8] sm:$0xf]
    %v686 = vld [vmem:[#allocation9 + $0xc] sm:$0xf]
    %v687 = vld [vmem:[#allocation9 + $0x10] sm:$0xf]
    %v688 = vld [vmem:[#allocation9 + $0x14] sm:$0xf]
    %v689 = vld [vmem:[#allocation9 + $0x18] sm:$0xf]
    %v690 = vld [vmem:[#allocation9 + $0x1c] sm:$0xf]
    %v691 = vld [vmem:[%s10] sm:$0x1]
    %v693 = vlaneseq
    %v694 = vshrl.u32 %v693, 7
    %v695 = vsub.s32 0, %v694
    %v696 = vrot.slane %v691, %v695
    %v706 = vunpack.c.l.b16 %v683
    %v707 = vunpack.c.l.b16 %v684
    %v708 = vunpack.c.l.b16 %v685
    %v709 = vunpack.c.l.b16 %v686
    %v710 = vunpack.c.l.b16 %v687
    %v711 = vunpack.c.l.b16 %v688
    %v712 = vunpack.c.l.b16 %v689
    %v713 = vunpack.c.l.b16 %v690
    %v714 = vpack.c.b16 %v707, %v706
    %v715 = vpack.c.b16 %v709, %v708
    %v716 = vpack.c.b16 %v711, %v710
    %v717 = vpack.c.b16 %v713, %v712
    %v723 = vsel %vm232, %v682, 0
    %725 = vmatprep.subr.bf16.mxu0 0
    %726 = vmatpush1.bf16.msra.mxu0 %v714
    %727 = vmatprep.subr.bf16.mxu0 0
    %728 = vmatpush1.bf16.msra.mxu0 %v715
    %729 = vmatprep.subr.bf16.mxu0 0
    %730 = vmatpush1.bf16.msra.mxu0 %v716
    %731 = vmatprep.subr.bf16.mxu0 0
    %732 = vmatpush1.bf16.msra.mxu0 %v717
    %733 = vmatprep.subr.bf16.mxu0 0
    %734 = vmatpush1.bf16.msra.mxu0 0
    %735 = vmatprep.subr.bf16.mxu0 0
    %736 = vmatpush1.bf16.msra.mxu0 0
    %737 = vmatprep.subr.bf16.mxu0 0
    %738 = vmatpush1.bf16.msra.mxu0 0
    %739 = vmatprep.subr.bf16.mxu0 0
    %740 = vmatpush1.bf16.msra.mxu0 0
    %741 = vmatprep.subr.bf16.mxu0 0
    %742 = vmatpush1.bf16.msra.mxu0 0
    %743 = vmatprep.subr.bf16.mxu0 0
    %744 = vmatpush1.bf16.msra.mxu0 0
    %745 = vmatprep.subr.bf16.mxu0 0
    %746 = vmatpush1.bf16.msra.mxu0 0
    %747 = vmatprep.subr.bf16.mxu0 0
    %748 = vmatpush1.bf16.msra.mxu0 0
    %749 = vmatprep.subr.bf16.mxu0 0
    %750 = vmatpush1.bf16.msra.mxu0 0
    %751 = vmatprep.subr.bf16.mxu0 0
    %752 = vmatpush1.bf16.msra.mxu0 0
    %753 = vmatprep.subr.bf16.mxu0 0
    %754 = vmatpush1.bf16.msra.mxu0 0
    %755 = vmatprep.subr.bf16.mxu0 0
    %756 = vmatpush1.bf16.msra.mxu0 0
    %757 = vmatprep.mubr.bf16.mxu0 0
    %758 = vmatmul.mubr.bf16.gmra.mrb[0].mxu0 %v723
    %v759 = vpop.f32.mrb[0].mxu0
    %v760 = vadd.f32 %v696, %v759
    %v761 = vpop.f32.mrb[0].mxu0
    %v762 = vpop.f32.mrb[0].mxu0
    %v763 = vpop.f32.mrb[0].mxu0
    %764 = vdwg.mxu0
    %765 = vst [vmem:[#allocation11] sm:$0x3] %v760
    %766 = vst.msk [vmem:[#allocation12] sm:$0x3] %vm570, %v581
    // Predicated region
    $region114: #{decoder_forward.1} parent=1 // pred_check
      _
    $region115: #{decoder_forward.1} parent=1 // pred_check_branch
      %768 = sbr.rel (0) target = $region117
    $region116: #{decoder_forward.1} parent=1 // pred_region
      %s770 = ssub.s32 32, 32
      %771 = vsyncadd [#allocation6], %s770
      %s773 = sshll.u32 [#allocation11], 4
      %s774 = int_to_ptr.vmem [resolvable:$true] %s773
      %776 = dma.vmem_to_hbm [thread:$0]  %s774, 32, %s11, [#allocation6]
    $region117: #{decoder_forward.1} parent=1 // pred_fallthru
      _
    // Predicated region
    $region118: #{decoder_forward.1} parent=1 // pred_check
      _
    $region119: #{decoder_forward.1} parent=1 // pred_check_branch
      %778 = sbr.rel (0) target = $region121
    $region120: #{decoder_forward.1} parent=1 // pred_region
      _
    $region121: #{decoder_forward.1} parent=1 // pred_fallthru
      _
    // Predicated region
    $region122: #{decoder_forward.1} parent=1 // pred_check
      _
    $region123: #{decoder_forward.1} parent=1 // pred_check_branch
      %780 = sbr.rel (0) target = $region125
    $region124: #{decoder_forward.1} parent=1 // pred_region
      _
    $region125: #{decoder_forward.1} parent=1 // pred_fallthru
      _
    // Predicated region
    $region126: #{decoder_forward.1} parent=1 // pred_check
      _
    $region127: #{decoder_forward.1} parent=1 // pred_check_branch
      %782 = sbr.rel (0) target = $region129
    $region128: #{decoder_forward.1} parent=1 // pred_region
      %s784 = ssub.s32 32, 32
      %785 = vsyncadd [#allocation13], %s784
      %s787 = sshll.u32 [#allocation12], 4
      %s788 = int_to_ptr.vmem [resolvable:$true] %s787
      %790 = dma.vmem_to_hbm [thread:$0]  %s788, 32, %s14, [#allocation13]
    $region129: #{decoder_forward.1} parent=1 // pred_fallthru
      _
    // Predicated region
    $region130: #{decoder_forward.1} parent=1 // pred_check
      _
    $region131: #{decoder_forward.1} parent=1 // pred_check_branch
      %792 = sbr.rel (0) target = $region133
    $region132: #{decoder_forward.1} parent=1 // pred_region
      %793 = dma.done [#allocation6], 32
    $region133: #{decoder_forward.1} parent=1 // pred_fallthru
      _
    // Predicated region
    $region134: #{decoder_forward.1} parent=1 // pred_check
      _
    $region135: #{decoder_forward.1} parent=1 // pred_check_branch
      %795 = sbr.rel (0) target = $region137
    $region136: #{decoder_forward.1} parent=1 // pred_region
      _
    $region137: #{decoder_forward.1} parent=1 // pred_fallthru
      _
    // Predicated region
    $region138: #{decoder_forward.1} parent=1 // pred_check
      _
    $region139: #{decoder_forward.1} parent=1 // pred_check_branch
      %797 = sbr.rel (0) target = $region141
    $region140: #{decoder_forward.1} parent=1 // pred_region
      _
    $region141: #{decoder_forward.1} parent=1 // pred_fallthru
      _
    // Predicated region
    $region142: #{decoder_forward.1} parent=1 // pred_check
      _
    $region143: #{decoder_forward.1} parent=1 // pred_check_branch
      %799 = sbr.rel (0) target = $region145
    $region144: #{decoder_forward.1} parent=1 // pred_region
      %800 = dma.done [#allocation13], 32
    $region145: #{decoder_forward.1} parent=1 // pred_fallthru
      _
    %801 = vsyncpa [#allocation5], 1
    %802 = vsyncpa [#allocation10], 1
    %803 = vsyncpa [#allocation6], 1
    %804 = vsyncpa [#allocation13], 1
    %805 = vsyncpa [#allocation7], 1
  %806 = vsyncmov [#allocation3]
  %s807 = vpop.sfrf %806
  %p808 = scmp.eq.s32.totalorder %s807, 0
  %p809 = pneg %p808
  %811 = shalt.err (%p809)
  %s812 = scalar_lea.sflag [#allocation3], 1
  %813 = vsyncmov %s812
  %s814 = vpop.sfrf %813
  %p815 = scmp.eq.s32.totalorder %s814, 0
  %p816 = pneg %p815
  %818 = shalt.err (%p816)

</llo_original>
